<compile_context>
chip_gen: v6e
topology: v6e:2x2x1
jax: 0.10.0
libtpu: 0.0.40
codegen_flags: <defaults>
</compile_context>

<pallas_src>
import functools

import jax
import jax.numpy as jnp
from jax.experimental import pallas as pl
from jax.experimental.pallas import tpu as pltpu


# ---------------------------------------------------------------------------
# Kernel
# ---------------------------------------------------------------------------
def lstm_fc_kernel(x_ref, wih0_ref, wts_ref, out_ref, *, T, B, H):
    """Whole problem fits in VMEM; one invocation runs the full recurrence
    with the packed state carried in vregs (no VMEM scratch round-trips)."""
    H2, H4 = 2 * H, 4 * H

    # ---- hoisted, time-invariant reads -------------------------------------
    w_comb = wts_ref[0:H2, :]            # (2H, 8H) fused recurrent weights
    w_fc = wts_ref[H2:H4, :]             # (2H, 8H) FC weights (h1 rows only)
    bias2 = wts_ref[H4:H4 + 2, :]        # rows: [b_all ; b_fc]
    b_all = bias2[0:1, :]                # (1, 8H)  interleaved [b0 | b1]
    b_fc = bias2[1:2, :]                 # (1, 8H)  FC bias in lanes [0:C)

    # Layer-0 input projection for ALL timesteps in one matmul (+ folded
    # biases).  wih0's layer-1 columns are zero, so those lanes carry b1.
    pre_all = (jnp.dot(x_ref[...], wih0_ref[...],
                       preferred_element_type=jnp.float32) + b_all)  # (T*B, 8H)
    # Per-step blocks: loop-invariant slices, off the recurrent critical path.
    pre_blk = [pre_all[t * B:(t + 1) * B, :] for t in range(T)]

    def packed_cell(g_all, c_pack):
        # g_all: (B, 8H) lanes [i0,i1,f0,f1,g0,g1,o0,o1]; c_pack: (B,2H) [c0|c1]
        sg = jax.nn.sigmoid(g_all)       # one EUP pass at full 8H width
        tg = jnp.tanh(g_all)
        i_p = sg[:, 0:H2]
        f_p = sg[:, H2:2 * H2]
        g_p = tg[:, 2 * H2:3 * H2]
        o_p = sg[:, 3 * H2:4 * H2]
        c_new = f_p * c_pack + i_p * g_p
        h_new = o_p * jnp.tanh(c_new)
        return h_new, c_new              # packed [h0|h1], [c0|c1]

    # ---- prologue: layer-0 cell at t=0 from the zero state -----------------
    h_pack, c_pack = packed_cell(pre_blk[0], jnp.zeros((B, H2), jnp.float32))
    lane = jax.lax.broadcasted_iota(jnp.int32, (B, H2), 1)
    keep0 = lane < H                     # keep layer-0 half, zero layer-1 half
    h_pack = jnp.where(keep0, h_pack, 0.0)   # [h0_0 | 0]
    c_pack = jnp.where(keep0, c_pack, 0.0)   # [c0_0 | 0]

    # ---- recurrence: T static, fully unrolled -------------------------------
    # Stage s enters with h_pack = [h0_s | h1_{s-1}].  One fused matmul gives
    # comb: layer-0 lanes = recurrent part of step s+1's layer-0 gates,
    # layer-1 lanes = step s's layer-1 gates.  Both gate chains then run in
    # parallel between consecutive matmuls.
    for s in range(T):
        comb = jnp.dot(h_pack, w_comb, preferred_element_type=jnp.float32)
        if s + 1 < T:
            g_all = comb + pre_blk[s + 1]
        else:
            # No x_T: the layer-0 half is dead (finite garbage that hits zero
            # FC weight rows); the layer-1 half still needs its bias.
            g_all = comb + b_all
        h_pack, c_pack = packed_cell(g_all, c_pack)
    # h_pack = [h0_T (unused) | h1_{T-1}]

    # ---- FC epilogue: lane-dense output, sliced back to C in the wrapper ---
    out_ref[...] = (jnp.dot(h_pack, w_fc, preferred_element_type=jnp.float32)
                    + b_fc)


# ---------------------------------------------------------------------------
# One-time parameter packing + jitted forward
# ---------------------------------------------------------------------------
def _interleave_gates(l0, l1, H):
    """l0, l1: (..., 4H) in PyTorch gate order [i,f,g,o].  Returns (..., 8H)
    with lanes [i0,i1,f0,f1,g0,g1,o0,o1] (layers interleaved per gate)."""
    parts = []
    for g in range(4):
        parts.append(l0[..., g * H:(g + 1) * H])
        parts.append(l1[..., g * H:(g + 1) * H])
    return jnp.concatenate(parts, axis=-1)


def prepare_params(params):
    """One-time packing of all weights into two kernel operands."""
    f32 = jnp.float32
    H = params["weight_hh_l0"].shape[1]
    I = params["weight_ih_l0"].shape[1]
    C = params["fc_weight"].shape[0]
    H8 = 8 * H
    zeros4 = lambda r: jnp.zeros((r, 4 * H), f32)

    # (I, 8H): layer-0 input-projection weights; layer-1 columns are zero.
    wih0_aug = _interleave_gates(params["weight_ih_l0"].T.astype(f32),
                                 zeros4(I), H)

    # (2H, 8H) fused recurrent weight: rows [0:H) multiply h0, [H:2H) h1.
    l0_cols = jnp.concatenate(
        [params["weight_hh_l0"].T.astype(f32), zeros4(H)], axis=0)
    l1_cols = jnp.concatenate(
        [params["weight_ih_l1"].T.astype(f32),
         params["weight_hh_l1"].T.astype(f32)], axis=0)
    w_comb = _interleave_gates(l0_cols, l1_cols, H)

    b0 = (params["bias_ih_l0"] + params["bias_hh_l0"]).astype(f32).reshape(1, 4 * H)
    b1 = (params["bias_ih_l1"] + params["bias_hh_l1"]).astype(f32).reshape(1, 4 * H)
    b_all = _interleave_gates(b0, b1, H)                         # (1, 8H)

    # FC folded onto the packed state: rows [H:2H) act on h1; rows [0:H) zero.
    w_fc = jnp.zeros((2 * H, H8), f32).at[H:2 * H, :C].set(
        params["fc_weight"].T.astype(f32))
    b_fc = jnp.zeros((1, H8), f32).at[0, :C].set(params["fc_bias"].astype(f32))

    # Single weight blob: [W_comb ; W_fc ; b_all ; b_fc] -> (4H+2, 8H).
    wts = jnp.concatenate([w_comb, w_fc, b_all, b_fc], axis=0)

    return {"wih0_aug": wih0_aug, "wts": wts,
            "hidden_size": H, "num_classes": C}


def make_forward(prep):
    """Returns a jitted fwd(x) closing over the pre-packed weights."""
    H = prep["hidden_size"]
    C = prep["num_classes"]
    wih0_aug = prep["wih0_aug"]
    wts = prep["wts"]

    @jax.jit
    def fwd(x):
        B, T, I = x.shape
        # time-major flatten so the hoisted input projection is one matmul.
        x_tm = jnp.transpose(x, (1, 0, 2)).reshape(T * B, I).astype(jnp.float32)
        kernel = functools.partial(lstm_fc_kernel, T=T, B=B, H=H)
        out_padded = pl.pallas_call(
            kernel,
            out_shape=jax.ShapeDtypeStruct((B, 8 * H), jnp.float32),
            in_specs=[pl.BlockSpec(memory_space=pltpu.MemorySpace.VMEM)] * 3,
            out_specs=pl.BlockSpec(memory_space=pltpu.MemorySpace.VMEM),
        )(x_tm, wih0_aug, wts)
        return out_padded[:, :C]

    return fwd


# ---------------------------------------------------------------------------
# Pure-JAX reference + init (PyTorch semantics)
# ---------------------------------------------------------------------------
def _jax_reference(x, params):
    B = x.shape[0]
    H = params["weight_hh_l0"].shape[1]

    def cell(x_t, h, c, wih, whh, bih, bhh):
        g = x_t @ wih.T + bih + h @ whh.T + bhh
        i = jax.nn.sigmoid(g[:, 0:H])
        f = jax.nn.sigmoid(g[:, H:2 * H])
        gg = jnp.tanh(g[:, 2 * H:3 * H])
        o = jax.nn.sigmoid(g[:, 3 * H:4 * H])
        c = f * c + i * gg
        h = o * jnp.tanh(c)
        return h, c

    h0 = c0 = h1 = c1 = jnp.zeros((B, H), jnp.float32)
    for t in range(x.shape[1]):
        h0, c0 = cell(x[:, t, :], h0, c0,
                      params["weight_ih_l0"], params["weight_hh_l0"],
                      params["bias_ih_l0"], params["bias_hh_l0"])
        h1, c1 = cell(h0, h1, c1,
                      params["weight_ih_l1"], params["weight_hh_l1"],
                      params["bias_ih_l1"], params["bias_hh_l1"])
    return h1 @ params["fc_weight"].T + params["fc_bias"]


def init_params(key, input_size, hidden_size, num_classes):
    """Deterministic init mimicking PyTorch's U(-1/sqrt(H), 1/sqrt(H))."""
    H = hidden_size
    bound = 1.0 / jnp.sqrt(jnp.float32(H))
    keys = jax.random.split(key, 10)

    def u(k, shape):
        return jax.random.uniform(k, shape, jnp.float32, -bound, bound)

    return {
        "weight_ih_l0": u(keys[0], (4 * H, input_size)),
        "weight_hh_l0": u(keys[1], (4 * H, H)),
        "bias_ih_l0":   u(keys[2], (4 * H,)),
        "bias_hh_l0":   u(keys[3], (4 * H,)),
        "weight_ih_l1": u(keys[4], (4 * H, H)),
        "weight_hh_l1": u(keys[5], (4 * H, H)),
        "bias_ih_l1":   u(keys[6], (4 * H,)),
        "bias_hh_l1":   u(keys[7], (4 * H,)),
        "fc_weight":    u(keys[8], (num_classes, H)),
        "fc_bias":      u(keys[9], (num_classes,)),
    }


if __name__ == "__main__":
    # Small shapes consistent with the module: (batch, seq, input) LSTM input.
    batch, seq_len, input_size = 2, 8, 28
    hidden_size, num_classes = 32, 10

    key = jax.random.PRNGKey(0)
    k_x, k_p = jax.random.split(key)
    x = jax.random.normal(k_x, (batch, seq_len, input_size), jnp.float32)
    params = init_params(k_p, input_size, hidden_size, num_classes)

    prep = prepare_params(params)          # one-time weight packing
    forward = make_forward(prep)

    out = forward(x)
    out = jax.block_until_ready(out)

    ref = _jax_reference(x, params)
    assert out.shape == (batch, num_classes)
    assert jnp.allclose(out, ref, atol=1e-5, rtol=1e-5), "mismatch vs reference"

    print("KERNEL_OK")
</pallas_src>

<mosaic_0001>
module attributes {stable_mosaic.version = 11 : i64} {
  func.func @lstm_fc_kernel(%arg0: memref<16x28xf32, #tpu.memory_space<vmem>>, %arg1: memref<28x256xf32, #tpu.memory_space<vmem>>, %arg2: memref<130x256xf32, #tpu.memory_space<vmem>>, %arg3: memref<2x256xf32, #tpu.memory_space<vmem>>) attributes {dimension_semantics = [], scalar_prefetch = 0 : i64, scratch_operands = 0 : i64, tpu.core_type = #tpu.core_type<tc>} {
    %c0 = arith.constant 0 : index
    %c0_0 = arith.constant 0 : index
    %0 = vector.load %arg2[%c0, %c0_0] : memref<130x256xf32, #tpu.memory_space<vmem>>, vector<64x256xf32>
    %c64 = arith.constant 64 : index
    %c0_1 = arith.constant 0 : index
    %1 = vector.load %arg2[%c64, %c0_1] : memref<130x256xf32, #tpu.memory_space<vmem>>, vector<64x256xf32>
    %c128 = arith.constant 128 : index
    %c0_2 = arith.constant 0 : index
    %2 = vector.load %arg2[%c128, %c0_2] : memref<130x256xf32, #tpu.memory_space<vmem>>, vector<2x256xf32>
    %3 = vector.extract_strided_slice %2 {offsets = [0, 0], sizes = [1, 256], strides = [1, 1]} : vector<2x256xf32> to vector<1x256xf32>
    %4 = vector.extract_strided_slice %2 {offsets = [1, 0], sizes = [1, 256], strides = [1, 1]} : vector<2x256xf32> to vector<1x256xf32>
    %c0_3 = arith.constant 0 : index
    %c0_4 = arith.constant 0 : index
    %5 = vector.load %arg0[%c0_3, %c0_4] : memref<16x28xf32, #tpu.memory_space<vmem>>, vector<16x28xf32>
    %c0_5 = arith.constant 0 : index
    %c0_6 = arith.constant 0 : index
    %6 = vector.load %arg1[%c0_5, %c0_6] : memref<28x256xf32, #tpu.memory_space<vmem>>, vector<28x256xf32>
    %cst = arith.constant dense<0.000000e+00> : vector<16x256xf32>
    %7 = tpu.matmul %5, %6, %cst {dimension_numbers = #tpu.dot_dimension_numbers<[1], [0], [0], [1], [0, 0, 1, 1], [], []>} : vector<16x28xf32>, vector<28x256xf32>, vector<16x256xf32> -> vector<16x256xf32>
    %8 = vector.broadcast %3 : vector<1x256xf32> to vector<16x256xf32>
    %9 = arith.addf %7, %8 : vector<16x256xf32>
    %10 = vector.extract_strided_slice %9 {offsets = [0, 0], sizes = [2, 256], strides = [1, 1]} : vector<16x256xf32> to vector<2x256xf32>
    %11 = vector.extract_strided_slice %9 {offsets = [2, 0], sizes = [2, 256], strides = [1, 1]} : vector<16x256xf32> to vector<2x256xf32>
    %12 = vector.extract_strided_slice %9 {offsets = [4, 0], sizes = [2, 256], strides = [1, 1]} : vector<16x256xf32> to vector<2x256xf32>
    %13 = vector.extract_strided_slice %9 {offsets = [6, 0], sizes = [2, 256], strides = [1, 1]} : vector<16x256xf32> to vector<2x256xf32>
    %14 = vector.extract_strided_slice %9 {offsets = [8, 0], sizes = [2, 256], strides = [1, 1]} : vector<16x256xf32> to vector<2x256xf32>
    %15 = vector.extract_strided_slice %9 {offsets = [10, 0], sizes = [2, 256], strides = [1, 1]} : vector<16x256xf32> to vector<2x256xf32>
    %16 = vector.extract_strided_slice %9 {offsets = [12, 0], sizes = [2, 256], strides = [1, 1]} : vector<16x256xf32> to vector<2x256xf32>
    %17 = vector.extract_strided_slice %9 {offsets = [14, 0], sizes = [2, 256], strides = [1, 1]} : vector<16x256xf32> to vector<2x256xf32>
    %cst_7 = arith.constant 0.000000e+00 : f32
    %18 = vector.broadcast %cst_7 : f32 to vector<2x64xf32>
    %19 = arith.negf %10 : vector<2x256xf32>
    %20 = math.exp %19 : vector<2x256xf32>
    %cst_8 = arith.constant 1.000000e+00 : f32
    %21 = vector.broadcast %cst_8 : f32 to vector<2x256xf32>
    %22 = arith.addf %21, %20 : vector<2x256xf32>
    %23 = arith.divf %21, %22 : vector<2x256xf32>
    %24 = math.tanh %10 : vector<2x256xf32>
    %25 = vector.extract_strided_slice %23 {offsets = [0, 0], sizes = [2, 64], strides = [1, 1]} : vector<2x256xf32> to vector<2x64xf32>
    %26 = vector.extract_strided_slice %23 {offsets = [0, 64], sizes = [2, 64], strides = [1, 1]} : vector<2x256xf32> to vector<2x64xf32>
    %27 = vector.extract_strided_slice %24 {offsets = [0, 128], sizes = [2, 64], strides = [1, 1]} : vector<2x256xf32> to vector<2x64xf32>
    %28 = vector.extract_strided_slice %23 {offsets = [0, 192], sizes = [2, 64], strides = [1, 1]} : vector<2x256xf32> to vector<2x64xf32>
    %29 = arith.mulf %26, %18 : vector<2x64xf32>
    %30 = arith.mulf %25, %27 : vector<2x64xf32>
    %31 = arith.addf %29, %30 : vector<2x64xf32>
    %32 = math.tanh %31 : vector<2x64xf32>
    %33 = arith.mulf %28, %32 : vector<2x64xf32>
    %34 = tpu.iota {dimensions = array<i32: 1>} : vector<2x64xi32>
    %c32_i32 = arith.constant 32 : i32
    %35 = vector.broadcast %c32_i32 : i32 to vector<2x64xi32>
    %36 = arith.cmpi slt, %34, %35 : vector<2x64xi32>
    %cst_9 = arith.constant 0.000000e+00 : f32
    %37 = vector.broadcast %cst_9 : f32 to vector<2x64xf32>
    %38 = arith.select %36, %33, %37 : vector<2x64xi1>, vector<2x64xf32>
    %cst_10 = arith.constant 0.000000e+00 : f32
    %39 = vector.broadcast %cst_10 : f32 to vector<2x64xf32>
    %40 = arith.select %36, %31, %39 : vector<2x64xi1>, vector<2x64xf32>
    %cst_11 = arith.constant dense<0.000000e+00> : vector<2x256xf32>
    %41 = tpu.matmul %38, %0, %cst_11 {dimension_numbers = #tpu.dot_dimension_numbers<[1], [0], [0], [1], [0, 0, 1, 1], [], []>} : vector<2x64xf32>, vector<64x256xf32>, vector<2x256xf32> -> vector<2x256xf32>
    %42 = arith.addf %41, %11 : vector<2x256xf32>
    %43 = arith.negf %42 : vector<2x256xf32>
    %44 = math.exp %43 : vector<2x256xf32>
    %cst_12 = arith.constant 1.000000e+00 : f32
    %45 = vector.broadcast %cst_12 : f32 to vector<2x256xf32>
    %46 = arith.addf %45, %44 : vector<2x256xf32>
    %47 = arith.divf %45, %46 : vector<2x256xf32>
    %48 = math.tanh %42 : vector<2x256xf32>
    %49 = vector.extract_strided_slice %47 {offsets = [0, 0], sizes = [2, 64], strides = [1, 1]} : vector<2x256xf32> to vector<2x64xf32>
    %50 = vector.extract_strided_slice %47 {offsets = [0, 64], sizes = [2, 64], strides = [1, 1]} : vector<2x256xf32> to vector<2x64xf32>
    %51 = vector.extract_strided_slice %48 {offsets = [0, 128], sizes = [2, 64], strides = [1, 1]} : vector<2x256xf32> to vector<2x64xf32>
    %52 = vector.extract_strided_slice %47 {offsets = [0, 192], sizes = [2, 64], strides = [1, 1]} : vector<2x256xf32> to vector<2x64xf32>
    %53 = arith.mulf %50, %40 : vector<2x64xf32>
    %54 = arith.mulf %49, %51 : vector<2x64xf32>
    %55 = arith.addf %53, %54 : vector<2x64xf32>
    %56 = math.tanh %55 : vector<2x64xf32>
    %57 = arith.mulf %52, %56 : vector<2x64xf32>
    %cst_13 = arith.constant dense<0.000000e+00> : vector<2x256xf32>
    %58 = tpu.matmul %57, %0, %cst_13 {dimension_numbers = #tpu.dot_dimension_numbers<[1], [0], [0], [1], [0, 0, 1, 1], [], []>} : vector<2x64xf32>, vector<64x256xf32>, vector<2x256xf32> -> vector<2x256xf32>
    %59 = arith.addf %58, %12 : vector<2x256xf32>
    %60 = arith.negf %59 : vector<2x256xf32>
    %61 = math.exp %60 : vector<2x256xf32>
    %cst_14 = arith.constant 1.000000e+00 : f32
    %62 = vector.broadcast %cst_14 : f32 to vector<2x256xf32>
    %63 = arith.addf %62, %61 : vector<2x256xf32>
    %64 = arith.divf %62, %63 : vector<2x256xf32>
    %65 = math.tanh %59 : vector<2x256xf32>
    %66 = vector.extract_strided_slice %64 {offsets = [0, 0], sizes = [2, 64], strides = [1, 1]} : vector<2x256xf32> to vector<2x64xf32>
    %67 = vector.extract_strided_slice %64 {offsets = [0, 64], sizes = [2, 64], strides = [1, 1]} : vector<2x256xf32> to vector<2x64xf32>
    %68 = vector.extract_strided_slice %65 {offsets = [0, 128], sizes = [2, 64], strides = [1, 1]} : vector<2x256xf32> to vector<2x64xf32>
    %69 = vector.extract_strided_slice %64 {offsets = [0, 192], sizes = [2, 64], strides = [1, 1]} : vector<2x256xf32> to vector<2x64xf32>
    %70 = arith.mulf %67, %55 : vector<2x64xf32>
    %71 = arith.mulf %66, %68 : vector<2x64xf32>
    %72 = arith.addf %70, %71 : vector<2x64xf32>
    %73 = math.tanh %72 : vector<2x64xf32>
    %74 = arith.mulf %69, %73 : vector<2x64xf32>
    %cst_15 = arith.constant dense<0.000000e+00> : vector<2x256xf32>
    %75 = tpu.matmul %74, %0, %cst_15 {dimension_numbers = #tpu.dot_dimension_numbers<[1], [0], [0], [1], [0, 0, 1, 1], [], []>} : vector<2x64xf32>, vector<64x256xf32>, vector<2x256xf32> -> vector<2x256xf32>
    %76 = arith.addf %75, %13 : vector<2x256xf32>
    %77 = arith.negf %76 : vector<2x256xf32>
    %78 = math.exp %77 : vector<2x256xf32>
    %cst_16 = arith.constant 1.000000e+00 : f32
    %79 = vector.broadcast %cst_16 : f32 to vector<2x256xf32>
    %80 = arith.addf %79, %78 : vector<2x256xf32>
    %81 = arith.divf %79, %80 : vector<2x256xf32>
    %82 = math.tanh %76 : vector<2x256xf32>
    %83 = vector.extract_strided_slice %81 {offsets = [0, 0], sizes = [2, 64], strides = [1, 1]} : vector<2x256xf32> to vector<2x64xf32>
    %84 = vector.extract_strided_slice %81 {offsets = [0, 64], sizes = [2, 64], strides = [1, 1]} : vector<2x256xf32> to vector<2x64xf32>
    %85 = vector.extract_strided_slice %82 {offsets = [0, 128], sizes = [2, 64], strides = [1, 1]} : vector<2x256xf32> to vector<2x64xf32>
    %86 = vector.extract_strided_slice %81 {offsets = [0, 192], sizes = [2, 64], strides = [1, 1]} : vector<2x256xf32> to vector<2x64xf32>
    %87 = arith.mulf %84, %72 : vector<2x64xf32>
    %88 = arith.mulf %83, %85 : vector<2x64xf32>
    %89 = arith.addf %87, %88 : vector<2x64xf32>
    %90 = math.tanh %89 : vector<2x64xf32>
    %91 = arith.mulf %86, %90 : vector<2x64xf32>
    %cst_17 = arith.constant dense<0.000000e+00> : vector<2x256xf32>
    %92 = tpu.matmul %91, %0, %cst_17 {dimension_numbers = #tpu.dot_dimension_numbers<[1], [0], [0], [1], [0, 0, 1, 1], [], []>} : vector<2x64xf32>, vector<64x256xf32>, vector<2x256xf32> -> vector<2x256xf32>
    %93 = arith.addf %92, %14 : vector<2x256xf32>
    %94 = arith.negf %93 : vector<2x256xf32>
    %95 = math.exp %94 : vector<2x256xf32>
    %cst_18 = arith.constant 1.000000e+00 : f32
    %96 = vector.broadcast %cst_18 : f32 to vector<2x256xf32>
    %97 = arith.addf %96, %95 : vector<2x256xf32>
    %98 = arith.divf %96, %97 : vector<2x256xf32>
    %99 = math.tanh %93 : vector<2x256xf32>
    %100 = vector.extract_strided_slice %98 {offsets = [0, 0], sizes = [2, 64], strides = [1, 1]} : vector<2x256xf32> to vector<2x64xf32>
    %101 = vector.extract_strided_slice %98 {offsets = [0, 64], sizes = [2, 64], strides = [1, 1]} : vector<2x256xf32> to vector<2x64xf32>
    %102 = vector.extract_strided_slice %99 {offsets = [0, 128], sizes = [2, 64], strides = [1, 1]} : vector<2x256xf32> to vector<2x64xf32>
    %103 = vector.extract_strided_slice %98 {offsets = [0, 192], sizes = [2, 64], strides = [1, 1]} : vector<2x256xf32> to vector<2x64xf32>
    %104 = arith.mulf %101, %89 : vector<2x64xf32>
    %105 = arith.mulf %100, %102 : vector<2x64xf32>
    %106 = arith.addf %104, %105 : vector<2x64xf32>
    %107 = math.tanh %106 : vector<2x64xf32>
    %108 = arith.mulf %103, %107 : vector<2x64xf32>
    %cst_19 = arith.constant dense<0.000000e+00> : vector<2x256xf32>
    %109 = tpu.matmul %108, %0, %cst_19 {dimension_numbers = #tpu.dot_dimension_numbers<[1], [0], [0], [1], [0, 0, 1, 1], [], []>} : vector<2x64xf32>, vector<64x256xf32>, vector<2x256xf32> -> vector<2x256xf32>
    %110 = arith.addf %109, %15 : vector<2x256xf32>
    %111 = arith.negf %110 : vector<2x256xf32>
    %112 = math.exp %111 : vector<2x256xf32>
    %cst_20 = arith.constant 1.000000e+00 : f32
    %113 = vector.broadcast %cst_20 : f32 to vector<2x256xf32>
    %114 = arith.addf %113, %112 : vector<2x256xf32>
    %115 = arith.divf %113, %114 : vector<2x256xf32>
    %116 = math.tanh %110 : vector<2x256xf32>
    %117 = vector.extract_strided_slice %115 {offsets = [0, 0], sizes = [2, 64], strides = [1, 1]} : vector<2x256xf32> to vector<2x64xf32>
    %118 = vector.extract_strided_slice %115 {offsets = [0, 64], sizes = [2, 64], strides = [1, 1]} : vector<2x256xf32> to vector<2x64xf32>
    %119 = vector.extract_strided_slice %116 {offsets = [0, 128], sizes = [2, 64], strides = [1, 1]} : vector<2x256xf32> to vector<2x64xf32>
    %120 = vector.extract_strided_slice %115 {offsets = [0, 192], sizes = [2, 64], strides = [1, 1]} : vector<2x256xf32> to vector<2x64xf32>
    %121 = arith.mulf %118, %106 : vector<2x64xf32>
    %122 = arith.mulf %117, %119 : vector<2x64xf32>
    %123 = arith.addf %121, %122 : vector<2x64xf32>
    %124 = math.tanh %123 : vector<2x64xf32>
    %125 = arith.mulf %120, %124 : vector<2x64xf32>
    %cst_21 = arith.constant dense<0.000000e+00> : vector<2x256xf32>
    %126 = tpu.matmul %125, %0, %cst_21 {dimension_numbers = #tpu.dot_dimension_numbers<[1], [0], [0], [1], [0, 0, 1, 1], [], []>} : vector<2x64xf32>, vector<64x256xf32>, vector<2x256xf32> -> vector<2x256xf32>
    %127 = arith.addf %126, %16 : vector<2x256xf32>
    %128 = arith.negf %127 : vector<2x256xf32>
    %129 = math.exp %128 : vector<2x256xf32>
    %cst_22 = arith.constant 1.000000e+00 : f32
    %130 = vector.broadcast %cst_22 : f32 to vector<2x256xf32>
    %131 = arith.addf %130, %129 : vector<2x256xf32>
    %132 = arith.divf %130, %131 : vector<2x256xf32>
    %133 = math.tanh %127 : vector<2x256xf32>
    %134 = vector.extract_strided_slice %132 {offsets = [0, 0], sizes = [2, 64], strides = [1, 1]} : vector<2x256xf32> to vector<2x64xf32>
    %135 = vector.extract_strided_slice %132 {offsets = [0, 64], sizes = [2, 64], strides = [1, 1]} : vector<2x256xf32> to vector<2x64xf32>
    %136 = vector.extract_strided_slice %133 {offsets = [0, 128], sizes = [2, 64], strides = [1, 1]} : vector<2x256xf32> to vector<2x64xf32>
    %137 = vector.extract_strided_slice %132 {offsets = [0, 192], sizes = [2, 64], strides = [1, 1]} : vector<2x256xf32> to vector<2x64xf32>
    %138 = arith.mulf %135, %123 : vector<2x64xf32>
    %139 = arith.mulf %134, %136 : vector<2x64xf32>
    %140 = arith.addf %138, %139 : vector<2x64xf32>
    %141 = math.tanh %140 : vector<2x64xf32>
    %142 = arith.mulf %137, %141 : vector<2x64xf32>
    %cst_23 = arith.constant dense<0.000000e+00> : vector<2x256xf32>
    %143 = tpu.matmul %142, %0, %cst_23 {dimension_numbers = #tpu.dot_dimension_numbers<[1], [0], [0], [1], [0, 0, 1, 1], [], []>} : vector<2x64xf32>, vector<64x256xf32>, vector<2x256xf32> -> vector<2x256xf32>
    %144 = arith.addf %143, %17 : vector<2x256xf32>
    %145 = arith.negf %144 : vector<2x256xf32>
    %146 = math.exp %145 : vector<2x256xf32>
    %cst_24 = arith.constant 1.000000e+00 : f32
    %147 = vector.broadcast %cst_24 : f32 to vector<2x256xf32>
    %148 = arith.addf %147, %146 : vector<2x256xf32>
    %149 = arith.divf %147, %148 : vector<2x256xf32>
    %150 = math.tanh %144 : vector<2x256xf32>
    %151 = vector.extract_strided_slice %149 {offsets = [0, 0], sizes = [2, 64], strides = [1, 1]} : vector<2x256xf32> to vector<2x64xf32>
    %152 = vector.extract_strided_slice %149 {offsets = [0, 64], sizes = [2, 64], strides = [1, 1]} : vector<2x256xf32> to vector<2x64xf32>
    %153 = vector.extract_strided_slice %150 {offsets = [0, 128], sizes = [2, 64], strides = [1, 1]} : vector<2x256xf32> to vector<2x64xf32>
    %154 = vector.extract_strided_slice %149 {offsets = [0, 192], sizes = [2, 64], strides = [1, 1]} : vector<2x256xf32> to vector<2x64xf32>
    %155 = arith.mulf %152, %140 : vector<2x64xf32>
    %156 = arith.mulf %151, %153 : vector<2x64xf32>
    %157 = arith.addf %155, %156 : vector<2x64xf32>
    %158 = math.tanh %157 : vector<2x64xf32>
    %159 = arith.mulf %154, %158 : vector<2x64xf32>
    %cst_25 = arith.constant dense<0.000000e+00> : vector<2x256xf32>
    %160 = tpu.matmul %159, %0, %cst_25 {dimension_numbers = #tpu.dot_dimension_numbers<[1], [0], [0], [1], [0, 0, 1, 1], [], []>} : vector<2x64xf32>, vector<64x256xf32>, vector<2x256xf32> -> vector<2x256xf32>
    %161 = vector.broadcast %3 : vector<1x256xf32> to vector<2x256xf32>
    %162 = arith.addf %160, %161 : vector<2x256xf32>
    %163 = arith.negf %162 : vector<2x256xf32>
    %164 = math.exp %163 : vector<2x256xf32>
    %cst_26 = arith.constant 1.000000e+00 : f32
    %165 = vector.broadcast %cst_26 : f32 to vector<2x256xf32>
    %166 = arith.addf %165, %164 : vector<2x256xf32>
    %167 = arith.divf %165, %166 : vector<2x256xf32>
    %168 = math.tanh %162 : vector<2x256xf32>
    %169 = vector.extract_strided_slice %167 {offsets = [0, 0], sizes = [2, 64], strides = [1, 1]} : vector<2x256xf32> to vector<2x64xf32>
    %170 = vector.extract_strided_slice %167 {offsets = [0, 64], sizes = [2, 64], strides = [1, 1]} : vector<2x256xf32> to vector<2x64xf32>
    %171 = vector.extract_strided_slice %168 {offsets = [0, 128], sizes = [2, 64], strides = [1, 1]} : vector<2x256xf32> to vector<2x64xf32>
    %172 = vector.extract_strided_slice %167 {offsets = [0, 192], sizes = [2, 64], strides = [1, 1]} : vector<2x256xf32> to vector<2x64xf32>
    %173 = arith.mulf %170, %157 : vector<2x64xf32>
    %174 = arith.mulf %169, %171 : vector<2x64xf32>
    %175 = arith.addf %173, %174 : vector<2x64xf32>
    %176 = math.tanh %175 : vector<2x64xf32>
    %177 = arith.mulf %172, %176 : vector<2x64xf32>
    %cst_27 = arith.constant dense<0.000000e+00> : vector<2x256xf32>
    %178 = tpu.matmul %177, %1, %cst_27 {dimension_numbers = #tpu.dot_dimension_numbers<[1], [0], [0], [1], [0, 0, 1, 1], [], []>} : vector<2x64xf32>, vector<64x256xf32>, vector<2x256xf32> -> vector<2x256xf32>
    %179 = vector.broadcast %4 : vector<1x256xf32> to vector<2x256xf32>
    %180 = arith.addf %178, %179 : vector<2x256xf32>
    %c0_28 = arith.constant 0 : index
    %c0_29 = arith.constant 0 : index
    %181 = vector.load %arg3[%c0_28, %c0_29] : memref<2x256xf32, #tpu.memory_space<vmem>>, vector<2x256xf32>
    tpu.vector_store %arg3[%c0_28, %c0_29], %180 {strides = array<i32>} : memref<2x256xf32, #tpu.memory_space<vmem>>, vector<2x256xf32>,
    return
  }
}

</mosaic_0001>

<llo_original>
// kernel: fwd.1
$region0: #{fwd.1}
  #allocation0 [shape = 'u32[]', space=smem, size = 0x4, offset = 0x4, fixed_abs, tag = 'smem constant byte address 0x4 - core index']
  #allocation1 [shape = 'u32[144,128]{1,0:T(1,128)}', space=vmem, size = 0x12000, scoped, tag = 'internal scratch']
  %s0 = inlined_call_operand.vmem [shape: f32[16,28], index: 0, kind: input, shape index: {}]
  %s1 = inlined_call_operand.hbm [shape: f32[28,256], index: 1, kind: input, shape index: {}]
  %s2 = inlined_call_operand.hbm [shape: f32[130,256], index: 2, kind: input, shape index: {}]
  %s3 = inlined_call_operand.vmem [shape: f32[2,256], index: 3, kind: output, shape index: {}]
  %s4 = sld [smem:[#allocation0]]
  $region30: #{fwd.1} parent=0
    _
  %s6 = ssub.s32 1, %s4
  %s7 = scalar_select 0, %s6, %s4
  $region1: #{fwd.1} parent=0
    #allocation2 [shape = 'u8[32768]{0}', space=vmem, size = 0x8000, scoped, tag = 'input window, operand 1, single buffered']
    #allocation3 [shape = 's32[1]{0}', space=sflag, size = 0x4, scoped, tag = 'scoped memory for fwd.1']
    #allocation4 [shape = 'u8[139264]{0}', space=vmem, size = 0x22000, scoped, tag = 'input window, operand 2, single buffered']
    #allocation5 [shape = 's32[1]{0}', space=sflag, size = 0x4, scoped, tag = 'scoped memory for fwd.1']
    %8 = vsyncpa [#allocation3], 0
    %9 = vsyncpa [#allocation5], 0
    // Predicated region
    $region2: #{fwd.1} parent=1 // pred_check
      _
    $region3: #{fwd.1} parent=1 // pred_check_branch
      %11 = sbr.rel (0) target = $region5
    $region4: #{fwd.1} parent=1 // pred_region
      _
    $region5: #{fwd.1} parent=1 // pred_fallthru
      _
    // Predicated region
    $region6: #{fwd.1} parent=1 // pred_check
      _
    $region7: #{fwd.1} parent=1 // pred_check_branch
      %13 = sbr.rel (0) target = $region9
    $region8: #{fwd.1} parent=1 // pred_region
      %s15 = ssub.s32 1024, 1024
      %16 = vsyncadd [#allocation3], %s15
      %s17 = sshll.u32 [#allocation2], 4
      %s18 = int_to_ptr.vmem [resolvable:$true] %s17
      %23 = dma.hbm_to_vmem [thread:$0]  %s1, 1024, %s18, [#allocation3], 256, 256, 16
    $region9: #{fwd.1} parent=1 // pred_fallthru
      _
    // Predicated region
    $region10: #{fwd.1} parent=1 // pred_check
      _
    $region11: #{fwd.1} parent=1 // pred_check_branch
      %25 = sbr.rel (0) target = $region13
    $region12: #{fwd.1} parent=1 // pred_region
      %s27 = ssub.s32 4352, 4352
      %28 = vsyncadd [#allocation5], %s27
      %s29 = sshll.u32 [#allocation4], 4
      %s30 = int_to_ptr.vmem [resolvable:$true] %s29
      %35 = dma.hbm_to_vmem [thread:$0]  %s2, 4352, %s30, [#allocation5], 256, 256, 16
    $region13: #{fwd.1} parent=1 // pred_fallthru
      _
    // Predicated region
    $region14: #{fwd.1} parent=1 // pred_check
      _
    $region15: #{fwd.1} parent=1 // pred_check_branch
      %37 = sbr.rel (0) target = $region17
    $region16: #{fwd.1} parent=1 // pred_region
      %38 = dma.done [#allocation3], 1024
    $region17: #{fwd.1} parent=1 // pred_fallthru
      _
    // Predicated region
    $region18: #{fwd.1} parent=1 // pred_check
      _
    $region19: #{fwd.1} parent=1 // pred_check_branch
      %40 = sbr.rel (0) target = $region21
    $region20: #{fwd.1} parent=1 // pred_region
      %41 = dma.done [#allocation5], 4352
    $region21: #{fwd.1} parent=1 // pred_fallthru
      _
    %v42 = vld [vmem:[#allocation4] sm:$0xff]
    %v43 = vld [vmem:[#allocation4 + $0x8] sm:$0xff]
    %v44 = vld [vmem:[#allocation4 + $0x10] sm:$0xff]
    %v45 = vld [vmem:[#allocation4 + $0x18] sm:$0xff]
    %v46 = vld [vmem:[#allocation4 + $0x20] sm:$0xff]
    %v47 = vld [vmem:[#allocation4 + $0x28] sm:$0xff]
    %v48 = vld [vmem:[#allocation4 + $0x30] sm:$0xff]
    %v49 = vld [vmem:[#allocation4 + $0x38] sm:$0xff]
    %v50 = vld [vmem:[#allocation4 + $0x40] sm:$0xff]
    %v51 = vld [vmem:[#allocation4 + $0x48] sm:$0xff]
    %v52 = vld [vmem:[#allocation4 + $0x50] sm:$0xff]
    %v53 = vld [vmem:[#allocation4 + $0x58] sm:$0xff]
    %v54 = vld [vmem:[#allocation4 + $0x60] sm:$0xff]
    %v55 = vld [vmem:[#allocation4 + $0x68] sm:$0xff]
    %v56 = vld [vmem:[#allocation4 + $0x70] sm:$0xff]
    %v57 = vld [vmem:[#allocation4 + $0x78] sm:$0xff]
    %v58 = vld [vmem:[#allocation4 + $0x80] sm:$0xff]
    %v59 = vld [vmem:[#allocation4 + $0x88] sm:$0xff]
    %v60 = vld [vmem:[#allocation4 + $0x90] sm:$0xff]
    %v61 = vld [vmem:[#allocation4 + $0x98] sm:$0xff]
    %v62 = vld [vmem:[#allocation4 + $0xa0] sm:$0xff]
    %v63 = vld [vmem:[#allocation4 + $0xa8] sm:$0xff]
    %v64 = vld [vmem:[#allocation4 + $0xb0] sm:$0xff]
    %v65 = vld [vmem:[#allocation4 + $0xb8] sm:$0xff]
    %v66 = vld [vmem:[#allocation4 + $0xc0] sm:$0xff]
    %v67 = vld [vmem:[#allocation4 + $0xc8] sm:$0xff]
    %v68 = vld [vmem:[#allocation4 + $0xd0] sm:$0xff]
    %v69 = vld [vmem:[#allocation4 + $0xd8] sm:$0xff]
    %v70 = vld [vmem:[#allocation4 + $0xe0] sm:$0xff]
    %v71 = vld [vmem:[#allocation4 + $0xe8] sm:$0xff]
    %v72 = vld [vmem:[#allocation4 + $0xf0] sm:$0xff]
    %v73 = vld [vmem:[#allocation4 + $0xf8] sm:$0xff]
    %v74 = vld [vmem:[#allocation4 + $0x100] sm:$0x3]
    %v75 = vld [vmem:[#allocation4 + $0x108] sm:$0x3]
    %v76 = vld [vmem:[%s0] sm:$0xff]
    %v77 = vld [vmem:[%s0 + $0x8] sm:$0xff]
    %v78 = vld [vmem:[#allocation2] sm:$0xff]
    %v79 = vld [vmem:[#allocation2 + $0x8] sm:$0xff]
    %v80 = vld [vmem:[#allocation2 + $0x10] sm:$0xff]
    %v81 = vld [vmem:[#allocation2 + $0x18] sm:$0xff]
    %v82 = vld [vmem:[#allocation2 + $0x20] sm:$0xff]
    %v83 = vld [vmem:[#allocation2 + $0x28] sm:$0xff]
    %v84 = vld [vmem:[#allocation2 + $0x30] sm:$0xf]
    %v85 = vld [vmem:[#allocation2 + $0x38] sm:$0xf]
    %v86 = vlaneseq
    %v87 = vshrl.u32 %v86, 7
    %v88 = vsub.s32 0, %v87
    %v89 = vrot.slane %v74, %v88
    %v90 = vlaneseq
    %v91 = vshrl.u32 %v90, 7
    %v92 = vsub.s32 0, %v91
    %v93 = vrot.slane %v75, %v92
    %vm94 = vcmask 228352
    %v96 = vsel %vm94, %v76, 0
    %v99 = vsel %vm94, %v77, 0
    %vm101 = vcmask 1043456
    %v103 = vsel %vm101, %v84, 0
    %v106 = vsel %vm101, %v85, 0
    %108 = vmatprep.subr.mxu0 0.0
    %109 = vmatpush1.msra.mxu0 0.0
    %110 = vmatprep.subr.mxu0 0.0
    %111 = vmatpush1.msra.mxu0 0.0
    %112 = vmatprep.subr.mxu0 0.0
    %113 = vmatpush1.msra.mxu0 0.0
    %114 = vmatprep.subr.mxu0 0.0
    %115 = vmatpush1.msra.mxu0 0.0
    %116 = vmatprep.subr.mxu0 0.0
    %117 = vmatpush1.msra.mxu0 0.0
    %118 = vmatprep.subr.mxu0 0.0
    %119 = vmatpush1.msra.mxu0 0.0
    %120 = vmatprep.subr.mxu0 0.0
    %121 = vmatpush1.msra.mxu0 0.0
    %122 = vmatprep.subr.mxu0 0.0
    %123 = vmatpush1.msra.mxu0 0.0
    %124 = vmatprep.subr.mxu0 0.0
    %125 = vmatpush1.msra.mxu0 0.0
    %126 = vmatprep.subr.mxu0 0.0
    %127 = vmatpush1.msra.mxu0 0.0
    %128 = vmatprep.subr.mxu0 0.0
    %129 = vmatpush1.msra.mxu0 0.0
    %130 = vmatprep.subr.mxu0 0.0
    %131 = vmatpush1.msra.mxu0 0.0
    %132 = vmatprep.subr.mxu0 %v106
    %133 = vmatpush1.msra.mxu0 %v103
    %134 = vmatprep.subr.mxu0 %v83
    %135 = vmatpush1.msra.mxu0 %v82
    %136 = vmatprep.subr.mxu0 %v81
    %137 = vmatpush1.msra.mxu0 %v80
    %138 = vmatprep.subr.mxu0 %v79
    %139 = vmatpush1.msra.mxu0 %v78
    %140 = vmatprep.subr.mxu0 0.0
    %141 = vmatpush2.msra.mxu0 0.0
    %142 = vmatprep.subr.mxu0 0.0
    %143 = vmatpush2.msra.mxu0 0.0
    %144 = vmatprep.subr.mxu0 0.0
    %145 = vmatpush2.msra.mxu0 0.0
    %146 = vmatprep.subr.mxu0 0.0
    %147 = vmatpush2.msra.mxu0 0.0
    %148 = vmatprep.subr.mxu0 0.0
    %149 = vmatpush2.msra.mxu0 0.0
    %150 = vmatprep.subr.mxu0 0.0
    %151 = vmatpush2.msra.mxu0 0.0
    %152 = vmatprep.subr.mxu0 0.0
    %153 = vmatpush2.msra.mxu0 0.0
    %154 = vmatprep.subr.mxu0 0.0
    %155 = vmatpush2.msra.mxu0 0.0
    %156 = vmatprep.subr.mxu0 0.0
    %157 = vmatpush2.msra.mxu0 0.0
    %158 = vmatprep.subr.mxu0 0.0
    %159 = vmatpush2.msra.mxu0 0.0
    %160 = vmatprep.subr.mxu0 0.0
    %161 = vmatpush2.msra.mxu0 0.0
    %162 = vmatprep.subr.mxu0 0.0
    %163 = vmatpush2.msra.mxu0 0.0
    %164 = vmatprep.subr.mxu0 0.0
    %165 = vmatpush2.msra.mxu0 0.0
    %166 = vmatprep.subr.mxu0 0.0
    %167 = vmatpush2.msra.mxu0 0.0
    %168 = vmatprep.subr.mxu0 0.0
    %169 = vmatpush2.msra.mxu0 0.0
    %170 = vmatprep.subr.mxu0 0.0
    %171 = vmatpush2.msra.mxu0 0.0
    %172 = vmatprep.mubr.f32.mxu0 0.0
    %173 = vmatmul.mubr.f32.gmra.mxu0 %v96
    %v174 = vpop.f32.mrf.mxu0
    %v175 = vadd.f32 %v89, %v174
    %v176 = vpop.f32.mrf.mxu0
    %v177 = vadd.f32 %v93, %v176
    %178 = vmatprep.mubr.f32.mxu0 0.0
    %179 = vmatmul.mubr.f32.gmra.mxu0 %v99
    %v180 = vpop.f32.mrf.mxu0
    %v181 = vadd.f32 %v89, %v180
    %v182 = vpop.f32.mrf.mxu0
    %v183 = vadd.f32 %v93, %v182
    %184 = vdwg.mxu0
    %v185 = vxor.u32 %v175, 2147483648
    %v186 = vxor.u32 %v177, 2147483648
    %v187 = vmul.f32 %v185, 1.442695
    %v188 = vpow.pop %v187
    %v189 = vmul.f32 %v186, 1.442695
    %v190 = vpow.pop %v189
    %v191 = vadd.f32 %v188, 1.0
    %v192 = vadd.f32 %v190, 1.0
    %v193 = vrcp.pop %v191
    %v194 = vmul.f32 1.0, %v193
    %v195 = vrcp.pop %v192
    %v196 = vmul.f32 1.0, %v195
    %v197 = vtanh.pop %v177
    %v198 = vmul.f32 %v194, 0.0
    %v199 = vmul.f32 %v194, %v197
    %201 = vrot.lane.b32.xlu0 %v199, 64
    %v202 = vpop.permute.xlu0 %201
    %v204 = vadd.f32 %v198, %v202
    %v205 = vtanh.pop %v204
    %v206 = vmul.f32 %v196, %v205
    %v207 = vlaneseq
    %v208 = vand.u32 %v207, 127
    %vm209 = vcmp.lt.s32.totalorder %v208, 32
    %211 = vrot.lane.b32.xlu0 %v206, 64
    %v212 = vpop.permute.xlu0 %211
    %v214 = vsel %vm209, %v212, 0.0
    %216 = vrot.lane.b32.xlu0 %v204, 64
    %v217 = vpop.permute.xlu0 %216
    %v219 = vsel %vm209, %v217, 0.0
    %v222 = vrot.slane %v175, 2
    %v223 = vrot.slane %v177, 2
    %vm226 = vcmask 523264
    %v228 = vsel %vm226, %v214, 0
    %230 = vmatprep.subr.mxu0 0.0
    %231 = vmatpush1.msra.mxu0 0.0
    %232 = vmatprep.subr.mxu0 0.0
    %233 = vmatpush1.msra.mxu0 0.0
    %234 = vmatprep.subr.mxu0 0.0
    %235 = vmatpush1.msra.mxu0 0.0
    %236 = vmatprep.subr.mxu0 0.0
    %237 = vmatpush1.msra.mxu0 0.0
    %238 = vmatprep.subr.mxu0 0.0
    %239 = vmatpush1.msra.mxu0 0.0
    %240 = vmatprep.subr.mxu0 0.0
    %241 = vmatpush1.msra.mxu0 0.0
    %242 = vmatprep.subr.mxu0 0.0
    %243 = vmatpush1.msra.mxu0 0.0
    %244 = vmatprep.subr.mxu0 0.0
    %245 = vmatpush1.msra.mxu0 0.0
    %246 = vmatprep.subr.mxu0 %v57
    %247 = vmatpush1.msra.mxu0 %v56
    %248 = vmatprep.subr.mxu0 %v55
    %249 = vmatpush1.msra.mxu0 %v54
    %250 = vmatprep.subr.mxu0 %v53
    %251 = vmatpush1.msra.mxu0 %v52
    %252 = vmatprep.subr.mxu0 %v51
    %253 = vmatpush1.msra.mxu0 %v50
    %254 = vmatprep.subr.mxu0 %v49
    %255 = vmatpush1.msra.mxu0 %v48
    %256 = vmatprep.subr.mxu0 %v47
    %257 = vmatpush1.msra.mxu0 %v46
    %258 = vmatprep.subr.mxu0 %v45
    %259 = vmatpush1.msra.mxu0 %v44
    %260 = vmatprep.subr.mxu0 %v43
    %261 = vmatpush1.msra.mxu0 %v42
    %262 = vmatprep.subr.mxu0 0.0
    %263 = vmatpush2.msra.mxu0 0.0
    %264 = vmatprep.subr.mxu0 0.0
    %265 = vmatpush2.msra.mxu0 0.0
    %266 = vmatprep.subr.mxu0 0.0
    %267 = vmatpush2.msra.mxu0 0.0
    %268 = vmatprep.subr.mxu0 0.0
    %269 = vmatpush2.msra.mxu0 0.0
    %270 = vmatprep.subr.mxu0 0.0
    %271 = vmatpush2.msra.mxu0 0.0
    %272 = vmatprep.subr.mxu0 0.0
    %273 = vmatpush2.msra.mxu0 0.0
    %274 = vmatprep.subr.mxu0 0.0
    %275 = vmatpush2.msra.mxu0 0.0
    %276 = vmatprep.subr.mxu0 0.0
    %277 = vmatpush2.msra.mxu0 0.0
    %278 = vmatprep.subr.mxu0 0.0
    %279 = vmatpush2.msra.mxu0 0.0
    %280 = vmatprep.subr.mxu0 0.0
    %281 = vmatpush2.msra.mxu0 0.0
    %282 = vmatprep.subr.mxu0 0.0
    %283 = vmatpush2.msra.mxu0 0.0
    %284 = vmatprep.subr.mxu0 0.0
    %285 = vmatpush2.msra.mxu0 0.0
    %286 = vmatprep.subr.mxu0 0.0
    %287 = vmatpush2.msra.mxu0 0.0
    %288 = vmatprep.subr.mxu0 0.0
    %289 = vmatpush2.msra.mxu0 0.0
    %290 = vmatprep.subr.mxu0 0.0
    %291 = vmatpush2.msra.mxu0 0.0
    %292 = vmatprep.subr.mxu0 0.0
    %293 = vmatpush2.msra.mxu0 0.0
    %294 = vmatprep.mubr.f32.mxu0 0.0
    %295 = vmatmul.mubr.f32.gmra.mxu0 %v228
    %v296 = vpop.f32.mrf.mxu0
    %v297 = vadd.f32 %v222, %v296
    %v298 = vpop.f32.mrf.mxu0
    %v299 = vadd.f32 %v223, %v298
    %300 = vdwg.mxu0
    %v301 = vxor.u32 %v297, 2147483648
    %v302 = vxor.u32 %v299, 2147483648
    %v303 = vmul.f32 %v301, 1.442695
    %v304 = vpow.pop %v303
    %v305 = vmul.f32 %v302, 1.442695
    %v306 = vpow.pop %v305
    %v307 = vadd.f32 %v304, 1.0
    %v308 = vadd.f32 %v306, 1.0
    %v309 = vrcp.pop %v307
    %v310 = vmul.f32 1.0, %v309
    %v311 = vrcp.pop %v308
    %v312 = vmul.f32 1.0, %v311
    %v313 = vtanh.pop %v299
    %315 = vrot.lane.b32.xlu0 %v219, 64
    %v316 = vpop.permute.xlu0 %315
    %v318 = vmul.f32 %v310, %v316
    %v319 = vmul.f32 %v310, %v313
    %321 = vrot.lane.b32.xlu0 %v319, 64
    %v322 = vpop.permute.xlu0 %321
    %v324 = vadd.f32 %v318, %v322
    %v325 = vtanh.pop %v324
    %v326 = vmul.f32 %v312, %v325
    %328 = vrot.lane.b32.xlu0 %v326, 64
    %v329 = vpop.permute.xlu0 %328
    %v330 = vrot.slane %v175, 4
    %v331 = vrot.slane %v177, 4
    %v334 = vsel %vm226, %v329, 0
    %336 = vmatprep.subr.mxu0 0.0
    %337 = vmatpush1.msra.mxu0 0.0
    %338 = vmatprep.subr.mxu0 0.0
    %339 = vmatpush1.msra.mxu0 0.0
    %340 = vmatprep.subr.mxu0 0.0
    %341 = vmatpush1.msra.mxu0 0.0
    %342 = vmatprep.subr.mxu0 0.0
    %343 = vmatpush1.msra.mxu0 0.0
    %344 = vmatprep.subr.mxu0 0.0
    %345 = vmatpush1.msra.mxu0 0.0
    %346 = vmatprep.subr.mxu0 0.0
    %347 = vmatpush1.msra.mxu0 0.0
    %348 = vmatprep.subr.mxu0 0.0
    %349 = vmatpush1.msra.mxu0 0.0
    %350 = vmatprep.subr.mxu0 0.0
    %351 = vmatpush1.msra.mxu0 0.0
    %352 = vmatprep.subr.mxu0 %v57
    %353 = vmatpush1.msra.mxu0 %v56
    %354 = vmatprep.subr.mxu0 %v55
    %355 = vmatpush1.msra.mxu0 %v54
    %356 = vmatprep.subr.mxu0 %v53
    %357 = vmatpush1.msra.mxu0 %v52
    %358 = vmatprep.subr.mxu0 %v51
    %359 = vmatpush1.msra.mxu0 %v50
    %360 = vmatprep.subr.mxu0 %v49
    %361 = vmatpush1.msra.mxu0 %v48
    %362 = vmatprep.subr.mxu0 %v47
    %363 = vmatpush1.msra.mxu0 %v46
    %364 = vmatprep.subr.mxu0 %v45
    %365 = vmatpush1.msra.mxu0 %v44
    %366 = vmatprep.subr.mxu0 %v43
    %367 = vmatpush1.msra.mxu0 %v42
    %368 = vmatprep.subr.mxu0 0.0
    %369 = vmatpush2.msra.mxu0 0.0
    %370 = vmatprep.subr.mxu0 0.0
    %371 = vmatpush2.msra.mxu0 0.0
    %372 = vmatprep.subr.mxu0 0.0
    %373 = vmatpush2.msra.mxu0 0.0
    %374 = vmatprep.subr.mxu0 0.0
    %375 = vmatpush2.msra.mxu0 0.0
    %376 = vmatprep.subr.mxu0 0.0
    %377 = vmatpush2.msra.mxu0 0.0
    %378 = vmatprep.subr.mxu0 0.0
    %379 = vmatpush2.msra.mxu0 0.0
    %380 = vmatprep.subr.mxu0 0.0
    %381 = vmatpush2.msra.mxu0 0.0
    %382 = vmatprep.subr.mxu0 0.0
    %383 = vmatpush2.msra.mxu0 0.0
    %384 = vmatprep.subr.mxu0 0.0
    %385 = vmatpush2.msra.mxu0 0.0
    %386 = vmatprep.subr.mxu0 0.0
    %387 = vmatpush2.msra.mxu0 0.0
    %388 = vmatprep.subr.mxu0 0.0
    %389 = vmatpush2.msra.mxu0 0.0
    %390 = vmatprep.subr.mxu0 0.0
    %391 = vmatpush2.msra.mxu0 0.0
    %392 = vmatprep.subr.mxu0 0.0
    %393 = vmatpush2.msra.mxu0 0.0
    %394 = vmatprep.subr.mxu0 0.0
    %395 = vmatpush2.msra.mxu0 0.0
    %396 = vmatprep.subr.mxu0 0.0
    %397 = vmatpush2.msra.mxu0 0.0
    %398 = vmatprep.subr.mxu0 0.0
    %399 = vmatpush2.msra.mxu0 0.0
    %400 = vmatprep.mubr.f32.mxu0 0.0
    %401 = vmatmul.mubr.f32.gmra.mxu0 %v334
    %v402 = vpop.f32.mrf.mxu0
    %v403 = vadd.f32 %v330, %v402
    %v404 = vpop.f32.mrf.mxu0
    %v405 = vadd.f32 %v331, %v404
    %406 = vdwg.mxu0
    %v407 = vxor.u32 %v403, 2147483648
    %v408 = vxor.u32 %v405, 2147483648
    %v409 = vmul.f32 %v407, 1.442695
    %v410 = vpow.pop %v409
    %v411 = vmul.f32 %v408, 1.442695
    %v412 = vpow.pop %v411
    %v413 = vadd.f32 %v410, 1.0
    %v414 = vadd.f32 %v412, 1.0
    %v415 = vrcp.pop %v413
    %v416 = vmul.f32 1.0, %v415
    %v417 = vrcp.pop %v414
    %v418 = vmul.f32 1.0, %v417
    %v419 = vtanh.pop %v405
    %v420 = vmul.f32 %v416, %v324
    %v421 = vmul.f32 %v416, %v419
    %423 = vrot.lane.b32.xlu0 %v421, 64
    %v424 = vpop.permute.xlu0 %423
    %v426 = vadd.f32 %v420, %v424
    %v427 = vtanh.pop %v426
    %v428 = vmul.f32 %v418, %v427
    %430 = vrot.lane.b32.xlu0 %v428, 64
    %v431 = vpop.permute.xlu0 %430
    %v432 = vrot.slane %v175, 6
    %v433 = vrot.slane %v177, 6
    %v436 = vsel %vm226, %v431, 0
    %438 = vmatprep.subr.mxu0 0.0
    %439 = vmatpush1.msra.mxu0 0.0
    %440 = vmatprep.subr.mxu0 0.0
    %441 = vmatpush1.msra.mxu0 0.0
    %442 = vmatprep.subr.mxu0 0.0
    %443 = vmatpush1.msra.mxu0 0.0
    %444 = vmatprep.subr.mxu0 0.0
    %445 = vmatpush1.msra.mxu0 0.0
    %446 = vmatprep.subr.mxu0 0.0
    %447 = vmatpush1.msra.mxu0 0.0
    %448 = vmatprep.subr.mxu0 0.0
    %449 = vmatpush1.msra.mxu0 0.0
    %450 = vmatprep.subr.mxu0 0.0
    %451 = vmatpush1.msra.mxu0 0.0
    %452 = vmatprep.subr.mxu0 0.0
    %453 = vmatpush1.msra.mxu0 0.0
    %454 = vmatprep.subr.mxu0 %v57
    %455 = vmatpush1.msra.mxu0 %v56
    %456 = vmatprep.subr.mxu0 %v55
    %457 = vmatpush1.msra.mxu0 %v54
    %458 = vmatprep.subr.mxu0 %v53
    %459 = vmatpush1.msra.mxu0 %v52
    %460 = vmatprep.subr.mxu0 %v51
    %461 = vmatpush1.msra.mxu0 %v50
    %462 = vmatprep.subr.mxu0 %v49
    %463 = vmatpush1.msra.mxu0 %v48
    %464 = vmatprep.subr.mxu0 %v47
    %465 = vmatpush1.msra.mxu0 %v46
    %466 = vmatprep.subr.mxu0 %v45
    %467 = vmatpush1.msra.mxu0 %v44
    %468 = vmatprep.subr.mxu0 %v43
    %469 = vmatpush1.msra.mxu0 %v42
    %470 = vmatprep.subr.mxu0 0.0
    %471 = vmatpush2.msra.mxu0 0.0
    %472 = vmatprep.subr.mxu0 0.0
    %473 = vmatpush2.msra.mxu0 0.0
    %474 = vmatprep.subr.mxu0 0.0
    %475 = vmatpush2.msra.mxu0 0.0
    %476 = vmatprep.subr.mxu0 0.0
    %477 = vmatpush2.msra.mxu0 0.0
    %478 = vmatprep.subr.mxu0 0.0
    %479 = vmatpush2.msra.mxu0 0.0
    %480 = vmatprep.subr.mxu0 0.0
    %481 = vmatpush2.msra.mxu0 0.0
    %482 = vmatprep.subr.mxu0 0.0
    %483 = vmatpush2.msra.mxu0 0.0
    %484 = vmatprep.subr.mxu0 0.0
    %485 = vmatpush2.msra.mxu0 0.0
    %486 = vmatprep.subr.mxu0 0.0
    %487 = vmatpush2.msra.mxu0 0.0
    %488 = vmatprep.subr.mxu0 0.0
    %489 = vmatpush2.msra.mxu0 0.0
    %490 = vmatprep.subr.mxu0 0.0
    %491 = vmatpush2.msra.mxu0 0.0
    %492 = vmatprep.subr.mxu0 0.0
    %493 = vmatpush2.msra.mxu0 0.0
    %494 = vmatprep.subr.mxu0 0.0
    %495 = vmatpush2.msra.mxu0 0.0
    %496 = vmatprep.subr.mxu0 0.0
    %497 = vmatpush2.msra.mxu0 0.0
    %498 = vmatprep.subr.mxu0 0.0
    %499 = vmatpush2.msra.mxu0 0.0
    %500 = vmatprep.subr.mxu0 0.0
    %501 = vmatpush2.msra.mxu0 0.0
    %502 = vmatprep.mubr.f32.mxu0 0.0
    %503 = vmatmul.mubr.f32.gmra.mxu0 %v436
    %v504 = vpop.f32.mrf.mxu0
    %v505 = vadd.f32 %v432, %v504
    %v506 = vpop.f32.mrf.mxu0
    %v507 = vadd.f32 %v433, %v506
    %508 = vdwg.mxu0
    %v509 = vxor.u32 %v505, 2147483648
    %v510 = vxor.u32 %v507, 2147483648
    %v511 = vmul.f32 %v509, 1.442695
    %v512 = vpow.pop %v511
    %v513 = vmul.f32 %v510, 1.442695
    %v514 = vpow.pop %v513
    %v515 = vadd.f32 %v512, 1.0
    %v516 = vadd.f32 %v514, 1.0
    %v517 = vrcp.pop %v515
    %v518 = vmul.f32 1.0, %v517
    %v519 = vrcp.pop %v516
    %v520 = vmul.f32 1.0, %v519
    %v521 = vtanh.pop %v507
    %v522 = vmul.f32 %v518, %v426
    %v523 = vmul.f32 %v518, %v521
    %525 = vrot.lane.b32.xlu0 %v523, 64
    %v526 = vpop.permute.xlu0 %525
    %v528 = vadd.f32 %v522, %v526
    %v529 = vtanh.pop %v528
    %v530 = vmul.f32 %v520, %v529
    %532 = vrot.lane.b32.xlu0 %v530, 64
    %v533 = vpop.permute.xlu0 %532
    %v534 = vsel %vm226, %v533, 0
    %536 = vmatprep.subr.mxu0 0.0
    %537 = vmatpush1.msra.mxu0 0.0
    %538 = vmatprep.subr.mxu0 0.0
    %539 = vmatpush1.msra.mxu0 0.0
    %540 = vmatprep.subr.mxu0 0.0
    %541 = vmatpush1.msra.mxu0 0.0
    %542 = vmatprep.subr.mxu0 0.0
    %543 = vmatpush1.msra.mxu0 0.0
    %544 = vmatprep.subr.mxu0 0.0
    %545 = vmatpush1.msra.mxu0 0.0
    %546 = vmatprep.subr.mxu0 0.0
    %547 = vmatpush1.msra.mxu0 0.0
    %548 = vmatprep.subr.mxu0 0.0
    %549 = vmatpush1.msra.mxu0 0.0
    %550 = vmatprep.subr.mxu0 0.0
    %551 = vmatpush1.msra.mxu0 0.0
    %552 = vmatprep.subr.mxu0 %v57
    %553 = vmatpush1.msra.mxu0 %v56
    %554 = vmatprep.subr.mxu0 %v55
    %555 = vmatpush1.msra.mxu0 %v54
    %556 = vmatprep.subr.mxu0 %v53
    %557 = vmatpush1.msra.mxu0 %v52
    %558 = vmatprep.subr.mxu0 %v51
    %559 = vmatpush1.msra.mxu0 %v50
    %560 = vmatprep.subr.mxu0 %v49
    %561 = vmatpush1.msra.mxu0 %v48
    %562 = vmatprep.subr.mxu0 %v47
    %563 = vmatpush1.msra.mxu0 %v46
    %564 = vmatprep.subr.mxu0 %v45
    %565 = vmatpush1.msra.mxu0 %v44
    %566 = vmatprep.subr.mxu0 %v43
    %567 = vmatpush1.msra.mxu0 %v42
    %568 = vmatprep.subr.mxu0 0.0
    %569 = vmatpush2.msra.mxu0 0.0
    %570 = vmatprep.subr.mxu0 0.0
    %571 = vmatpush2.msra.mxu0 0.0
    %572 = vmatprep.subr.mxu0 0.0
    %573 = vmatpush2.msra.mxu0 0.0
    %574 = vmatprep.subr.mxu0 0.0
    %575 = vmatpush2.msra.mxu0 0.0
    %576 = vmatprep.subr.mxu0 0.0
    %577 = vmatpush2.msra.mxu0 0.0
    %578 = vmatprep.subr.mxu0 0.0
    %579 = vmatpush2.msra.mxu0 0.0
    %580 = vmatprep.subr.mxu0 0.0
    %581 = vmatpush2.msra.mxu0 0.0
    %582 = vmatprep.subr.mxu0 0.0
    %583 = vmatpush2.msra.mxu0 0.0
    %584 = vmatprep.subr.mxu0 0.0
    %585 = vmatpush2.msra.mxu0 0.0
    %586 = vmatprep.subr.mxu0 0.0
    %587 = vmatpush2.msra.mxu0 0.0
    %588 = vmatprep.subr.mxu0 0.0
    %589 = vmatpush2.msra.mxu0 0.0
    %590 = vmatprep.subr.mxu0 0.0
    %591 = vmatpush2.msra.mxu0 0.0
    %592 = vmatprep.subr.mxu0 0.0
    %593 = vmatpush2.msra.mxu0 0.0
    %594 = vmatprep.subr.mxu0 0.0
    %595 = vmatpush2.msra.mxu0 0.0
    %596 = vmatprep.subr.mxu0 0.0
    %597 = vmatpush2.msra.mxu0 0.0
    %598 = vmatprep.subr.mxu0 0.0
    %599 = vmatpush2.msra.mxu0 0.0
    %600 = vmatprep.mubr.f32.mxu0 0.0
    %601 = vmatmul.mubr.f32.gmra.mxu0 %v534
    %v602 = vpop.f32.mrf.mxu0
    %v603 = vadd.f32 %v181, %v602
    %v604 = vpop.f32.mrf.mxu0
    %v605 = vadd.f32 %v183, %v604
    %606 = vdwg.mxu0
    %v607 = vxor.u32 %v603, 2147483648
    %v608 = vxor.u32 %v605, 2147483648
    %v609 = vmul.f32 %v607, 1.442695
    %v610 = vpow.pop %v609
    %v611 = vmul.f32 %v608, 1.442695
    %v612 = vpow.pop %v611
    %v613 = vadd.f32 %v610, 1.0
    %v614 = vadd.f32 %v612, 1.0
    %v615 = vrcp.pop %v613
    %v616 = vmul.f32 1.0, %v615
    %v617 = vrcp.pop %v614
    %v618 = vmul.f32 1.0, %v617
    %v619 = vtanh.pop %v605
    %v620 = vmul.f32 %v616, %v528
    %v621 = vmul.f32 %v616, %v619
    %623 = vrot.lane.b32.xlu0 %v621, 64
    %v624 = vpop.permute.xlu0 %623
    %v626 = vadd.f32 %v620, %v624
    %v627 = vtanh.pop %v626
    %v628 = vmul.f32 %v618, %v627
    %630 = vrot.lane.b32.xlu0 %v628, 64
    %v631 = vpop.permute.xlu0 %630
    %v634 = vrot.slane %v181, 2
    %v635 = vrot.slane %v183, 2
    %v638 = vsel %vm226, %v631, 0
    %640 = vmatprep.subr.mxu0 0.0
    %641 = vmatpush1.msra.mxu0 0.0
    %642 = vmatprep.subr.mxu0 0.0
    %643 = vmatpush1.msra.mxu0 0.0
    %644 = vmatprep.subr.mxu0 0.0
    %645 = vmatpush1.msra.mxu0 0.0
    %646 = vmatprep.subr.mxu0 0.0
    %647 = vmatpush1.msra.mxu0 0.0
    %648 = vmatprep.subr.mxu0 0.0
    %649 = vmatpush1.msra.mxu0 0.0
    %650 = vmatprep.subr.mxu0 0.0
    %651 = vmatpush1.msra.mxu0 0.0
    %652 = vmatprep.subr.mxu0 0.0
    %653 = vmatpush1.msra.mxu0 0.0
    %654 = vmatprep.subr.mxu0 0.0
    %655 = vmatpush1.msra.mxu0 0.0
    %656 = vmatprep.subr.mxu0 %v57
    %657 = vmatpush1.msra.mxu0 %v56
    %658 = vmatprep.subr.mxu0 %v55
    %659 = vmatpush1.msra.mxu0 %v54
    %660 = vmatprep.subr.mxu0 %v53
    %661 = vmatpush1.msra.mxu0 %v52
    %662 = vmatprep.subr.mxu0 %v51
    %663 = vmatpush1.msra.mxu0 %v50
    %664 = vmatprep.subr.mxu0 %v49
    %665 = vmatpush1.msra.mxu0 %v48
    %666 = vmatprep.subr.mxu0 %v47
    %667 = vmatpush1.msra.mxu0 %v46
    %668 = vmatprep.subr.mxu0 %v45
    %669 = vmatpush1.msra.mxu0 %v44
    %670 = vmatprep.subr.mxu0 %v43
    %671 = vmatpush1.msra.mxu0 %v42
    %672 = vmatprep.subr.mxu0 0.0
    %673 = vmatpush2.msra.mxu0 0.0
    %674 = vmatprep.subr.mxu0 0.0
    %675 = vmatpush2.msra.mxu0 0.0
    %676 = vmatprep.subr.mxu0 0.0
    %677 = vmatpush2.msra.mxu0 0.0
    %678 = vmatprep.subr.mxu0 0.0
    %679 = vmatpush2.msra.mxu0 0.0
    %680 = vmatprep.subr.mxu0 0.0
    %681 = vmatpush2.msra.mxu0 0.0
    %682 = vmatprep.subr.mxu0 0.0
    %683 = vmatpush2.msra.mxu0 0.0
    %684 = vmatprep.subr.mxu0 0.0
    %685 = vmatpush2.msra.mxu0 0.0
    %686 = vmatprep.subr.mxu0 0.0
    %687 = vmatpush2.msra.mxu0 0.0
    %688 = vmatprep.subr.mxu0 0.0
    %689 = vmatpush2.msra.mxu0 0.0
    %690 = vmatprep.subr.mxu0 0.0
    %691 = vmatpush2.msra.mxu0 0.0
    %692 = vmatprep.subr.mxu0 0.0
    %693 = vmatpush2.msra.mxu0 0.0
    %694 = vmatprep.subr.mxu0 0.0
    %695 = vmatpush2.msra.mxu0 0.0
    %696 = vmatprep.subr.mxu0 0.0
    %697 = vmatpush2.msra.mxu0 0.0
    %698 = vmatprep.subr.mxu0 0.0
    %699 = vmatpush2.msra.mxu0 0.0
    %700 = vmatprep.subr.mxu0 0.0
    %701 = vmatpush2.msra.mxu0 0.0
    %702 = vmatprep.subr.mxu0 0.0
    %703 = vmatpush2.msra.mxu0 0.0
    %704 = vmatprep.mubr.f32.mxu0 0.0
    %705 = vmatmul.mubr.f32.gmra.mxu0 %v638
    %v706 = vpop.f32.mrf.mxu0
    %v707 = vadd.f32 %v634, %v706
    %v708 = vpop.f32.mrf.mxu0
    %v709 = vadd.f32 %v635, %v708
    %710 = vdwg.mxu0
    %v711 = vxor.u32 %v707, 2147483648
    %v712 = vxor.u32 %v709, 2147483648
    %v713 = vmul.f32 %v711, 1.442695
    %v714 = vpow.pop %v713
    %v715 = vmul.f32 %v712, 1.442695
    %v716 = vpow.pop %v715
    %v717 = vadd.f32 %v714, 1.0
    %v718 = vadd.f32 %v716, 1.0
    %v719 = vrcp.pop %v717
    %v720 = vmul.f32 1.0, %v719
    %v721 = vrcp.pop %v718
    %v722 = vmul.f32 1.0, %v721
    %v723 = vtanh.pop %v709
    %v724 = vmul.f32 %v720, %v626
    %v725 = vmul.f32 %v720, %v723
    %727 = vrot.lane.b32.xlu0 %v725, 64
    %v728 = vpop.permute.xlu0 %727
    %v730 = vadd.f32 %v724, %v728
    %v731 = vtanh.pop %v730
    %v732 = vmul.f32 %v722, %v731
    %734 = vrot.lane.b32.xlu0 %v732, 64
    %v735 = vpop.permute.xlu0 %734
    %v736 = vrot.slane %v181, 4
    %v737 = vrot.slane %v183, 4
    %v740 = vsel %vm226, %v735, 0
    %742 = vmatprep.subr.mxu0 0.0
    %743 = vmatpush1.msra.mxu0 0.0
    %744 = vmatprep.subr.mxu0 0.0
    %745 = vmatpush1.msra.mxu0 0.0
    %746 = vmatprep.subr.mxu0 0.0
    %747 = vmatpush1.msra.mxu0 0.0
    %748 = vmatprep.subr.mxu0 0.0
    %749 = vmatpush1.msra.mxu0 0.0
    %750 = vmatprep.subr.mxu0 0.0
    %751 = vmatpush1.msra.mxu0 0.0
    %752 = vmatprep.subr.mxu0 0.0
    %753 = vmatpush1.msra.mxu0 0.0
    %754 = vmatprep.subr.mxu0 0.0
    %755 = vmatpush1.msra.mxu0 0.0
    %756 = vmatprep.subr.mxu0 0.0
    %757 = vmatpush1.msra.mxu0 0.0
    %758 = vmatprep.subr.mxu0 %v57
    %759 = vmatpush1.msra.mxu0 %v56
    %760 = vmatprep.subr.mxu0 %v55
    %761 = vmatpush1.msra.mxu0 %v54
    %762 = vmatprep.subr.mxu0 %v53
    %763 = vmatpush1.msra.mxu0 %v52
    %764 = vmatprep.subr.mxu0 %v51
    %765 = vmatpush1.msra.mxu0 %v50
    %766 = vmatprep.subr.mxu0 %v49
    %767 = vmatpush1.msra.mxu0 %v48
    %768 = vmatprep.subr.mxu0 %v47
    %769 = vmatpush1.msra.mxu0 %v46
    %770 = vmatprep.subr.mxu0 %v45
    %771 = vmatpush1.msra.mxu0 %v44
    %772 = vmatprep.subr.mxu0 %v43
    %773 = vmatpush1.msra.mxu0 %v42
    %774 = vmatprep.subr.mxu0 0.0
    %775 = vmatpush2.msra.mxu0 0.0
    %776 = vmatprep.subr.mxu0 0.0
    %777 = vmatpush2.msra.mxu0 0.0
    %778 = vmatprep.subr.mxu0 0.0
    %779 = vmatpush2.msra.mxu0 0.0
    %780 = vmatprep.subr.mxu0 0.0
    %781 = vmatpush2.msra.mxu0 0.0
    %782 = vmatprep.subr.mxu0 0.0
    %783 = vmatpush2.msra.mxu0 0.0
    %784 = vmatprep.subr.mxu0 0.0
    %785 = vmatpush2.msra.mxu0 0.0
    %786 = vmatprep.subr.mxu0 0.0
    %787 = vmatpush2.msra.mxu0 0.0
    %788 = vmatprep.subr.mxu0 0.0
    %789 = vmatpush2.msra.mxu0 0.0
    %790 = vmatprep.subr.mxu0 0.0
    %791 = vmatpush2.msra.mxu0 0.0
    %792 = vmatprep.subr.mxu0 0.0
    %793 = vmatpush2.msra.mxu0 0.0
    %794 = vmatprep.subr.mxu0 0.0
    %795 = vmatpush2.msra.mxu0 0.0
    %796 = vmatprep.subr.mxu0 0.0
    %797 = vmatpush2.msra.mxu0 0.0
    %798 = vmatprep.subr.mxu0 0.0
    %799 = vmatpush2.msra.mxu0 0.0
    %800 = vmatprep.subr.mxu0 0.0
    %801 = vmatpush2.msra.mxu0 0.0
    %802 = vmatprep.subr.mxu0 0.0
    %803 = vmatpush2.msra.mxu0 0.0
    %804 = vmatprep.subr.mxu0 0.0
    %805 = vmatpush2.msra.mxu0 0.0
    %806 = vmatprep.mubr.f32.mxu0 0.0
    %807 = vmatmul.mubr.f32.gmra.mxu0 %v740
    %v808 = vpop.f32.mrf.mxu0
    %v809 = vadd.f32 %v736, %v808
    %v810 = vpop.f32.mrf.mxu0
    %v811 = vadd.f32 %v737, %v810
    %812 = vdwg.mxu0
    %v813 = vxor.u32 %v809, 2147483648
    %v814 = vxor.u32 %v811, 2147483648
    %v815 = vmul.f32 %v813, 1.442695
    %v816 = vpow.pop %v815
    %v817 = vmul.f32 %v814, 1.442695
    %v818 = vpow.pop %v817
    %v819 = vadd.f32 %v816, 1.0
    %v820 = vadd.f32 %v818, 1.0
    %v821 = vrcp.pop %v819
    %v822 = vmul.f32 1.0, %v821
    %v823 = vrcp.pop %v820
    %v824 = vmul.f32 1.0, %v823
    %v825 = vtanh.pop %v811
    %v826 = vmul.f32 %v822, %v730
    %v827 = vmul.f32 %v822, %v825
    %829 = vrot.lane.b32.xlu0 %v827, 64
    %v830 = vpop.permute.xlu0 %829
    %v832 = vadd.f32 %v826, %v830
    %v833 = vtanh.pop %v832
    %v834 = vmul.f32 %v824, %v833
    %836 = vrot.lane.b32.xlu0 %v834, 64
    %v837 = vpop.permute.xlu0 %836
    %v838 = vrot.slane %v181, 6
    %v839 = vrot.slane %v183, 6
    %v842 = vsel %vm226, %v837, 0
    %844 = vmatprep.subr.mxu0 0.0
    %845 = vmatpush1.msra.mxu0 0.0
    %846 = vmatprep.subr.mxu0 0.0
    %847 = vmatpush1.msra.mxu0 0.0
    %848 = vmatprep.subr.mxu0 0.0
    %849 = vmatpush1.msra.mxu0 0.0
    %850 = vmatprep.subr.mxu0 0.0
    %851 = vmatpush1.msra.mxu0 0.0
    %852 = vmatprep.subr.mxu0 0.0
    %853 = vmatpush1.msra.mxu0 0.0
    %854 = vmatprep.subr.mxu0 0.0
    %855 = vmatpush1.msra.mxu0 0.0
    %856 = vmatprep.subr.mxu0 0.0
    %857 = vmatpush1.msra.mxu0 0.0
    %858 = vmatprep.subr.mxu0 0.0
    %859 = vmatpush1.msra.mxu0 0.0
    %860 = vmatprep.subr.mxu0 %v57
    %861 = vmatpush1.msra.mxu0 %v56
    %862 = vmatprep.subr.mxu0 %v55
    %863 = vmatpush1.msra.mxu0 %v54
    %864 = vmatprep.subr.mxu0 %v53
    %865 = vmatpush1.msra.mxu0 %v52
    %866 = vmatprep.subr.mxu0 %v51
    %867 = vmatpush1.msra.mxu0 %v50
    %868 = vmatprep.subr.mxu0 %v49
    %869 = vmatpush1.msra.mxu0 %v48
    %870 = vmatprep.subr.mxu0 %v47
    %871 = vmatpush1.msra.mxu0 %v46
    %872 = vmatprep.subr.mxu0 %v45
    %873 = vmatpush1.msra.mxu0 %v44
    %874 = vmatprep.subr.mxu0 %v43
    %875 = vmatpush1.msra.mxu0 %v42
    %876 = vmatprep.subr.mxu0 0.0
    %877 = vmatpush2.msra.mxu0 0.0
    %878 = vmatprep.subr.mxu0 0.0
    %879 = vmatpush2.msra.mxu0 0.0
    %880 = vmatprep.subr.mxu0 0.0
    %881 = vmatpush2.msra.mxu0 0.0
    %882 = vmatprep.subr.mxu0 0.0
    %883 = vmatpush2.msra.mxu0 0.0
    %884 = vmatprep.subr.mxu0 0.0
    %885 = vmatpush2.msra.mxu0 0.0
    %886 = vmatprep.subr.mxu0 0.0
    %887 = vmatpush2.msra.mxu0 0.0
    %888 = vmatprep.subr.mxu0 0.0
    %889 = vmatpush2.msra.mxu0 0.0
    %890 = vmatprep.subr.mxu0 0.0
    %891 = vmatpush2.msra.mxu0 0.0
    %892 = vmatprep.subr.mxu0 0.0
    %893 = vmatpush2.msra.mxu0 0.0
    %894 = vmatprep.subr.mxu0 0.0
    %895 = vmatpush2.msra.mxu0 0.0
    %896 = vmatprep.subr.mxu0 0.0
    %897 = vmatpush2.msra.mxu0 0.0
    %898 = vmatprep.subr.mxu0 0.0
    %899 = vmatpush2.msra.mxu0 0.0
    %900 = vmatprep.subr.mxu0 0.0
    %901 = vmatpush2.msra.mxu0 0.0
    %902 = vmatprep.subr.mxu0 0.0
    %903 = vmatpush2.msra.mxu0 0.0
    %904 = vmatprep.subr.mxu0 0.0
    %905 = vmatpush2.msra.mxu0 0.0
    %906 = vmatprep.subr.mxu0 0.0
    %907 = vmatpush2.msra.mxu0 0.0
    %908 = vmatprep.mubr.f32.mxu0 0.0
    %909 = vmatmul.mubr.f32.gmra.mxu0 %v842
    %v910 = vpop.f32.mrf.mxu0
    %v911 = vadd.f32 %v838, %v910
    %v912 = vpop.f32.mrf.mxu0
    %v913 = vadd.f32 %v839, %v912
    %914 = vdwg.mxu0
    %v915 = vxor.u32 %v911, 2147483648
    %v916 = vxor.u32 %v913, 2147483648
    %v917 = vmul.f32 %v915, 1.442695
    %v918 = vpow.pop %v917
    %v919 = vmul.f32 %v916, 1.442695
    %v920 = vpow.pop %v919
    %v921 = vadd.f32 %v918, 1.0
    %v922 = vadd.f32 %v920, 1.0
    %v923 = vrcp.pop %v921
    %v924 = vmul.f32 1.0, %v923
    %v925 = vrcp.pop %v922
    %v926 = vmul.f32 1.0, %v925
    %v927 = vtanh.pop %v913
    %v928 = vmul.f32 %v924, %v832
    %v929 = vmul.f32 %v924, %v927
    %931 = vrot.lane.b32.xlu0 %v929, 64
    %v932 = vpop.permute.xlu0 %931
    %v934 = vadd.f32 %v928, %v932
    %v935 = vtanh.pop %v934
    %v936 = vmul.f32 %v926, %v935
    %938 = vrot.lane.b32.xlu0 %v936, 64
    %v939 = vpop.permute.xlu0 %938
    %v940 = vsel %vm226, %v939, 0
    %942 = vmatprep.subr.mxu0 0.0
    %943 = vmatpush1.msra.mxu0 0.0
    %944 = vmatprep.subr.mxu0 0.0
    %945 = vmatpush1.msra.mxu0 0.0
    %946 = vmatprep.subr.mxu0 0.0
    %947 = vmatpush1.msra.mxu0 0.0
    %948 = vmatprep.subr.mxu0 0.0
    %949 = vmatpush1.msra.mxu0 0.0
    %950 = vmatprep.subr.mxu0 0.0
    %951 = vmatpush1.msra.mxu0 0.0
    %952 = vmatprep.subr.mxu0 0.0
    %953 = vmatpush1.msra.mxu0 0.0
    %954 = vmatprep.subr.mxu0 0.0
    %955 = vmatpush1.msra.mxu0 0.0
    %956 = vmatprep.subr.mxu0 0.0
    %957 = vmatpush1.msra.mxu0 0.0
    %958 = vmatprep.subr.mxu0 %v57
    %959 = vmatpush1.msra.mxu0 %v56
    %960 = vmatprep.subr.mxu0 %v55
    %961 = vmatpush1.msra.mxu0 %v54
    %962 = vmatprep.subr.mxu0 %v53
    %963 = vmatpush1.msra.mxu0 %v52
    %964 = vmatprep.subr.mxu0 %v51
    %965 = vmatpush1.msra.mxu0 %v50
    %966 = vmatprep.subr.mxu0 %v49
    %967 = vmatpush1.msra.mxu0 %v48
    %968 = vmatprep.subr.mxu0 %v47
    %969 = vmatpush1.msra.mxu0 %v46
    %970 = vmatprep.subr.mxu0 %v45
    %971 = vmatpush1.msra.mxu0 %v44
    %972 = vmatprep.subr.mxu0 %v43
    %973 = vmatpush1.msra.mxu0 %v42
    %974 = vmatprep.subr.mxu0 0.0
    %975 = vmatpush2.msra.mxu0 0.0
    %976 = vmatprep.subr.mxu0 0.0
    %977 = vmatpush2.msra.mxu0 0.0
    %978 = vmatprep.subr.mxu0 0.0
    %979 = vmatpush2.msra.mxu0 0.0
    %980 = vmatprep.subr.mxu0 0.0
    %981 = vmatpush2.msra.mxu0 0.0
    %982 = vmatprep.subr.mxu0 0.0
    %983 = vmatpush2.msra.mxu0 0.0
    %984 = vmatprep.subr.mxu0 0.0
    %985 = vmatpush2.msra.mxu0 0.0
    %986 = vmatprep.subr.mxu0 0.0
    %987 = vmatpush2.msra.mxu0 0.0
    %988 = vmatprep.subr.mxu0 0.0
    %989 = vmatpush2.msra.mxu0 0.0
    %990 = vmatprep.subr.mxu0 0.0
    %991 = vmatpush2.msra.mxu0 0.0
    %992 = vmatprep.subr.mxu0 0.0
    %993 = vmatpush2.msra.mxu0 0.0
    %994 = vmatprep.subr.mxu0 0.0
    %995 = vmatpush2.msra.mxu0 0.0
    %996 = vmatprep.subr.mxu0 0.0
    %997 = vmatpush2.msra.mxu0 0.0
    %998 = vmatprep.subr.mxu0 0.0
    %999 = vmatpush2.msra.mxu0 0.0
    %1000 = vmatprep.subr.mxu0 0.0
    %1001 = vmatpush2.msra.mxu0 0.0
    %1002 = vmatprep.subr.mxu0 0.0
    %1003 = vmatpush2.msra.mxu0 0.0
    %1004 = vmatprep.subr.mxu0 0.0
    %1005 = vmatpush2.msra.mxu0 0.0
    %1006 = vmatprep.mubr.f32.mxu0 0.0
    %1007 = vmatmul.mubr.f32.gmra.mxu0 %v940
    %v1008 = vpop.f32.mrf.mxu0
    %v1009 = vadd.f32 %v89, %v1008
    %v1010 = vpop.f32.mrf.mxu0
    %v1011 = vadd.f32 %v93, %v1010
    %1012 = vdwg.mxu0
    %v1013 = vxor.u32 %v1009, 2147483648
    %v1014 = vxor.u32 %v1011, 2147483648
    %v1015 = vmul.f32 %v1013, 1.442695
    %v1016 = vpow.pop %v1015
    %v1017 = vmul.f32 %v1014, 1.442695
    %v1018 = vpow.pop %v1017
    %v1019 = vadd.f32 %v1016, 1.0
    %v1020 = vadd.f32 %v1018, 1.0
    %v1021 = vrcp.pop %v1019
    %v1022 = vmul.f32 1.0, %v1021
    %v1023 = vrcp.pop %v1020
    %v1024 = vmul.f32 1.0, %v1023
    %v1025 = vtanh.pop %v1011
    %v1026 = vmul.f32 %v1022, %v934
    %v1027 = vmul.f32 %v1022, %v1025
    %1029 = vrot.lane.b32.xlu0 %v1027, 64
    %v1030 = vpop.permute.xlu0 %1029
    %v1032 = vadd.f32 %v1026, %v1030
    %v1033 = vtanh.pop %v1032
    %v1034 = vmul.f32 %v1024, %v1033
    %v1035 = vlaneseq
    %v1036 = vshrl.u32 %v1035, 7
    %v1037 = vsub.s32 1, %v1036
    %v1038 = vrot.slane %v74, %v1037
    %v1039 = vlaneseq
    %v1040 = vshrl.u32 %v1039, 7
    %v1041 = vsub.s32 1, %v1040
    %v1042 = vrot.slane %v75, %v1041
    %1044 = vrot.lane.b32.xlu0 %v1034, 64
    %v1045 = vpop.permute.xlu0 %1044
    %v1046 = vsel %vm226, %v1045, 0
    %1048 = vmatprep.subr.mxu0 0.0
    %1049 = vmatpush1.msra.mxu0 0.0
    %1050 = vmatprep.subr.mxu0 0.0
    %1051 = vmatpush1.msra.mxu0 0.0
    %1052 = vmatprep.subr.mxu0 0.0
    %1053 = vmatpush1.msra.mxu0 0.0
    %1054 = vmatprep.subr.mxu0 0.0
    %1055 = vmatpush1.msra.mxu0 0.0
    %1056 = vmatprep.subr.mxu0 0.0
    %1057 = vmatpush1.msra.mxu0 0.0
    %1058 = vmatprep.subr.mxu0 0.0
    %1059 = vmatpush1.msra.mxu0 0.0
    %1060 = vmatprep.subr.mxu0 0.0
    %1061 = vmatpush1.msra.mxu0 0.0
    %1062 = vmatprep.subr.mxu0 0.0
    %1063 = vmatpush1.msra.mxu0 0.0
    %1064 = vmatprep.subr.mxu0 %v73
    %1065 = vmatpush1.msra.mxu0 %v72
    %1066 = vmatprep.subr.mxu0 %v71
    %1067 = vmatpush1.msra.mxu0 %v70
    %1068 = vmatprep.subr.mxu0 %v69
    %1069 = vmatpush1.msra.mxu0 %v68
    %1070 = vmatprep.subr.mxu0 %v67
    %1071 = vmatpush1.msra.mxu0 %v66
    %1072 = vmatprep.subr.mxu0 %v65
    %1073 = vmatpush1.msra.mxu0 %v64
    %1074 = vmatprep.subr.mxu0 %v63
    %1075 = vmatpush1.msra.mxu0 %v62
    %1076 = vmatprep.subr.mxu0 %v61
    %1077 = vmatpush1.msra.mxu0 %v60
    %1078 = vmatprep.subr.mxu0 %v59
    %1079 = vmatpush1.msra.mxu0 %v58
    %1080 = vmatprep.subr.mxu0 0.0
    %1081 = vmatpush2.msra.mxu0 0.0
    %1082 = vmatprep.subr.mxu0 0.0
    %1083 = vmatpush2.msra.mxu0 0.0
    %1084 = vmatprep.subr.mxu0 0.0
    %1085 = vmatpush2.msra.mxu0 0.0
    %1086 = vmatprep.subr.mxu0 0.0
    %1087 = vmatpush2.msra.mxu0 0.0
    %1088 = vmatprep.subr.mxu0 0.0
    %1089 = vmatpush2.msra.mxu0 0.0
    %1090 = vmatprep.subr.mxu0 0.0
    %1091 = vmatpush2.msra.mxu0 0.0
    %1092 = vmatprep.subr.mxu0 0.0
    %1093 = vmatpush2.msra.mxu0 0.0
    %1094 = vmatprep.subr.mxu0 0.0
    %1095 = vmatpush2.msra.mxu0 0.0
    %1096 = vmatprep.subr.mxu0 0.0
    %1097 = vmatpush2.msra.mxu0 0.0
    %1098 = vmatprep.subr.mxu0 0.0
    %1099 = vmatpush2.msra.mxu0 0.0
    %1100 = vmatprep.subr.mxu0 0.0
    %1101 = vmatpush2.msra.mxu0 0.0
    %1102 = vmatprep.subr.mxu0 0.0
    %1103 = vmatpush2.msra.mxu0 0.0
    %1104 = vmatprep.subr.mxu0 0.0
    %1105 = vmatpush2.msra.mxu0 0.0
    %1106 = vmatprep.subr.mxu0 0.0
    %1107 = vmatpush2.msra.mxu0 0.0
    %1108 = vmatprep.subr.mxu0 0.0
    %1109 = vmatpush2.msra.mxu0 0.0
    %1110 = vmatprep.subr.mxu0 0.0
    %1111 = vmatpush2.msra.mxu0 0.0
    %1112 = vmatprep.mubr.f32.mxu0 0.0
    %1113 = vmatmul.mubr.f32.gmra.mxu0 %v1046
    %v1114 = vpop.f32.mrf.mxu0
    %v1115 = vadd.f32 %v1038, %v1114
    %v1116 = vpop.f32.mrf.mxu0
    %v1117 = vadd.f32 %v1042, %v1116
    %1118 = vdwg.mxu0
    %v1121 = vcombine.low %v1115, %v1117
    %v1123 = vunpack.c.l.s4 1983009808
    %v1124 = vunpack.c.0.s8 %v1123
    %v1125 = vlaneseq
    %v1126 = vshrl.u32 %v1125, 7
    %v1127 = vsub.s32 %v1124, %v1126
    %v1128 = vrot.slane %v1121, %v1127
    %1130 = vst [vmem:[%s3] sm:$0xf] %v1128
    // Predicated region
    $region22: #{fwd.1} parent=1 // pred_check
      _
    $region23: #{fwd.1} parent=1 // pred_check_branch
      %1132 = sbr.rel (0) target = $region25
    $region24: #{fwd.1} parent=1 // pred_region
      _
    $region25: #{fwd.1} parent=1 // pred_fallthru
      _
    // Predicated region
    $region26: #{fwd.1} parent=1 // pred_check
      _
    $region27: #{fwd.1} parent=1 // pred_check_branch
      %1134 = sbr.rel (0) target = $region29
    $region28: #{fwd.1} parent=1 // pred_region
      _
    $region29: #{fwd.1} parent=1 // pred_fallthru
      _
    %1135 = vsyncpa [#allocation3], 1
    %1136 = vsyncpa [#allocation5], 1

</llo_original>
